<compile_context>
chip_gen: v6e
topology: v6e:2x2x1
jax: 0.10.0
libtpu: 0.0.40
codegen_flags: <defaults>
</compile_context>

<pallas_src>
import functools

import jax
import jax.numpy as jnp
from jax import lax
from jax.experimental import pallas as pl
from jax.experimental.pallas import tpu as pltpu

TEMPERATURE = 0.05   # unused by the kernel: exp(./t) is monotone, indices-only use
Z = 8                # top-k size
_CARRY_LANES = 128   # lane-aligned carry width; only the first Z lanes are live
_MAX_TILE_N = 8192   # memory-bank rows per grid step


def _topz_kernel(proto_ref, pts_ref, idx_ref, vcarry_ref, icarry_ref, *, n_total):
    n = pl.program_id(0)
    P = proto_ref.shape[0]
    tile_n = pts_ref.shape[0]

    # ---- init carried state (and output buffer) on the first tile ------------
    @pl.when(n == 0)
    def _init():
        vcarry_ref[...] = jnp.full((P, _CARRY_LANES), -jnp.inf, dtype=jnp.float32)
        icarry_ref[...] = jnp.zeros((P, _CARRY_LANES), dtype=jnp.int32)
        idx_ref[...] = jnp.zeros((P, _CARRY_LANES), dtype=jnp.int32)

    # Similarity scores for this tile: contract on D directly (no transpose of
    # the memory bank); f32 accumulation on the MXU.
    dots = lax.dot_general(proto_ref[...], pts_ref[...],
                           (((1,), (1,)), ((), ())),
                           preferred_element_type=jnp.float32)        # (P, tile_n)

    # Global memory-bank row index of every tile column.
    gcol = n * tile_n + lax.broadcasted_iota(jnp.int32, (P, tile_n), 1)

    if n_total % tile_n != 0:
        # Partial last block: columns past the true bank size never win.
        dots = jnp.where(gcol < n_total, dots, -jnp.inf)

    # Candidate set = {carried top-Z} U {this tile's columns}.
    cand_v = jnp.concatenate([vcarry_ref[...], dots], axis=1)         # (P, 128+tile_n)
    cand_i = jnp.concatenate([icarry_ref[...], gcol], axis=1)         # int32

    neg_inf = jnp.float32(-jnp.inf)
    big = jnp.int32(n_total + _CARRY_LANES + tile_n)

    # Z iterative argmax passes; exact ties resolved to the smallest global
    # index (same as lax.top_k).  Dead carry lanes hold -inf, never selected.
    for k in range(Z):
        row_max = jnp.max(cand_v, axis=1, keepdims=True)              # (P, 1)
        is_max = cand_v == row_max
        sel_idx = jnp.min(jnp.where(is_max, cand_i, big), axis=1, keepdims=True)
        vcarry_ref[:, k:k + 1] = row_max
        icarry_ref[:, k:k + 1] = sel_idx
        idx_ref[:, k:k + 1] = sel_idx                                 # final tile's write wins
        cand_v = jnp.where(is_max & (cand_i == sel_idx), neg_inf, cand_v)


def _choose_tile_n(n):
    # Single tile when the bank is small (block == full dim is always legal);
    # otherwise a fixed lane/sublane-friendly tile -- the partial last block is
    # handled by in-kernel masking, so no divisibility fallback is needed.
    return n if n <= _MAX_TILE_N else _MAX_TILE_N


def invariance_propagation_loss(prototypes, points, *, tile_n=None):
    """prototypes: (P, D), memory-bank points: (N, D) -> scalar MSE loss (f32)."""
    P, D = prototypes.shape
    N, D2 = points.shape
    assert D == D2, "feature dims must match"
    assert N >= Z, "memory bank must hold at least z points"

    if tile_n is None:
        tile_n = _choose_tile_n(N)
    assert tile_n == N or tile_n % 8 == 0, "tile_n must be sublane-aligned"

    num_tiles = pl.cdiv(N, tile_n)

    grid_spec = pltpu.PrefetchScalarGridSpec(
        num_scalar_prefetch=0,
        grid=(num_tiles,),
        in_specs=[
            pl.BlockSpec((P, D), lambda n: (0, 0)),         # prototypes: resident
            pl.BlockSpec((tile_n, D), lambda n: (n, 0)),    # memory bank: streamed
        ],
        out_specs=pl.BlockSpec((P, _CARRY_LANES), lambda n: (0, 0)),
        scratch_shapes=[
            pltpu.VMEM((P, _CARRY_LANES), jnp.float32),     # carried top-Z values
            pltpu.VMEM((P, _CARRY_LANES), jnp.int32),       # carried top-Z global indices
        ],
    )

    # TODO(synk): v7x megacore — add a leading "parallel" grid axis of size 2
    # with per-shard carries/outputs and merge the 2Z candidates per row in the
    # epilogue to use the second TensorCore.
    idx_out = pl.pallas_call(
        functools.partial(_topz_kernel, n_total=N),
        out_shape=jax.ShapeDtypeStruct((P, _CARRY_LANES), jnp.int32),
        grid_spec=grid_spec,
        compiler_params=pltpu.CompilerParams(
            dimension_semantics=("arbitrary",)),            # carried reduction over N tiles
    )(prototypes, points)

    idx = idx_out[:, :Z]                                    # (P, Z) top-Z bank rows
    # Trivial epilogue: gather the Z*P (=64 here) selected rows once, average,
    # and take the MSE against the prototypes (all in f32).
    pseudo = jnp.mean(jnp.take(points, idx, axis=0).astype(jnp.float32), axis=1)
    proto = prototypes.astype(jnp.float32)
    return jnp.mean((pseudo - proto) ** 2)


def _reference(prototypes, points):
    proto = prototypes.astype(jnp.float32)
    pts = points.astype(jnp.float32)
    sim = jnp.exp((proto @ pts.T) / TEMPERATURE)            # matches the torch spec
    _, idx = lax.top_k(sim, Z)                              # (P, z)
    pseudo = jnp.mean(pts[idx], axis=1)                     # (P, D)
    return jnp.mean((pseudo - proto) ** 2)


if __name__ == "__main__":
    P, N, D = 8, 520, 128   # prototypes, memory-bank size (not tile-aligned), feature dim
    key = jax.random.PRNGKey(0)
    kp, km = jax.random.split(key)

    prototypes = jax.random.normal(kp, (P, D), dtype=jnp.float32)
    prototypes = prototypes / jnp.linalg.norm(prototypes, axis=1, keepdims=True)
    points = jax.random.normal(km, (N, D), dtype=jnp.float32)
    points = points / jnp.linalg.norm(points, axis=1, keepdims=True)

    ref = _reference(prototypes, points)

    # multi-tile streamed path with a partial last tile (520 = 4*128 + 8)
    loss_tiled = jax.block_until_ready(
        invariance_propagation_loss(prototypes, points, tile_n=128))
    assert jnp.allclose(loss_tiled, ref, rtol=1e-4, atol=1e-5), (loss_tiled, ref)

    # single-tile path (auto tile choice: tile_n = N)
    loss_single = jax.block_until_ready(
        invariance_propagation_loss(prototypes, points))
    assert jnp.allclose(loss_single, ref, rtol=1e-4, atol=1e-5), (loss_single, ref)

    # bf16 memory-bank stream (halves HBM traffic).  Selection can only differ
    # from the f32 reference at near-ties, so sanity-check finiteness only.
    loss_bf16 = jax.block_until_ready(
        invariance_propagation_loss(prototypes.astype(jnp.bfloat16),
                                    points.astype(jnp.bfloat16), tile_n=128))
    assert bool(jnp.isfinite(loss_bf16)), loss_bf16

    print("KERNEL_OK")
</pallas_src>

<mosaic_0001>
module attributes {stable_mosaic.version = 11 : i64} {
  func.func @_topz_kernel(%arg0: i32, %arg1: memref<8x128xf32, #tpu.memory_space<vmem>>, %arg2: memref<128x128xf32, #tpu.memory_space<vmem>>, %arg3: memref<8x128xi32, #tpu.memory_space<vmem>>, %arg4: memref<8x128xf32, #tpu.memory_space<vmem>>, %arg5: memref<8x128xi32, #tpu.memory_space<vmem>>) attributes {dimension_semantics = [#tpu.dimension_semantics<arbitrary>], iteration_bounds = array<i64: 5>, scalar_prefetch = 0 : i64, scratch_operands = 2 : i64, tpu.core_type = #tpu.core_type<tc>, window_params = [{pipeline_mode = #tpu.pipeline_mode<synchronous>, transform_indices = @transform_0, window_bounds = array<i64: 8, 128>}, {transform_indices = @transform_1, window_bounds = array<i64: 128, 128>}, {pipeline_mode = #tpu.pipeline_mode<synchronous>, transform_indices = @transform_2, window_bounds = array<i64: 8, 128>}]} {
    %c0_i32 = arith.constant 0 : i32
    %0 = arith.cmpi eq, %arg0, %c0_i32 : i32
    %1 = arith.extui %0 : i1 to i32
    %c0_i32_0 = arith.constant 0 : i32
    %2 = arith.cmpi ne, %1, %c0_i32_0 : i32
    scf.if %2 {
      %cst_80 = arith.constant 0xFF800000 : f32
      %141 = vector.broadcast %cst_80 : f32 to vector<8x128xf32>
      %c0_81 = arith.constant 0 : index
      %c0_82 = arith.constant 0 : index
      %142 = vector.load %arg4[%c0_81, %c0_82] : memref<8x128xf32, #tpu.memory_space<vmem>>, vector<8x128xf32>
      tpu.vector_store %arg4[%c0_81, %c0_82], %141 {strides = array<i32>} : memref<8x128xf32, #tpu.memory_space<vmem>>, vector<8x128xf32>,
      %c0_i32_83 = arith.constant 0 : i32
      %143 = vector.broadcast %c0_i32_83 : i32 to vector<8x128xi32>
      %c0_84 = arith.constant 0 : index
      %c0_85 = arith.constant 0 : index
      %144 = vector.load %arg5[%c0_84, %c0_85] : memref<8x128xi32, #tpu.memory_space<vmem>>, vector<8x128xi32>
      tpu.vector_store %arg5[%c0_84, %c0_85], %143 {strides = array<i32>} : memref<8x128xi32, #tpu.memory_space<vmem>>, vector<8x128xi32>,
      %c0_i32_86 = arith.constant 0 : i32
      %145 = vector.broadcast %c0_i32_86 : i32 to vector<8x128xi32>
      %c0_87 = arith.constant 0 : index
      %c0_88 = arith.constant 0 : index
      %146 = vector.load %arg3[%c0_87, %c0_88] : memref<8x128xi32, #tpu.memory_space<vmem>>, vector<8x128xi32>
      tpu.vector_store %arg3[%c0_87, %c0_88], %145 {strides = array<i32>} : memref<8x128xi32, #tpu.memory_space<vmem>>, vector<8x128xi32>,
    } else {
    }
    %c0 = arith.constant 0 : index
    %c0_1 = arith.constant 0 : index
    %3 = vector.load %arg1[%c0, %c0_1] : memref<8x128xf32, #tpu.memory_space<vmem>>, vector<8x128xf32>
    %c0_2 = arith.constant 0 : index
    %c0_3 = arith.constant 0 : index
    %4 = vector.load %arg2[%c0_2, %c0_3] : memref<128x128xf32, #tpu.memory_space<vmem>>, vector<128x128xf32>
    %cst = arith.constant dense<0.000000e+00> : vector<8x128xf32>
    %5 = tpu.matmul %3, %4, %cst {dimension_numbers = #tpu.dot_dimension_numbers<[1], [1], [0], [0], [0, 0, 1, 0], [], []>} : vector<8x128xf32>, vector<128x128xf32>, vector<8x128xf32> -> vector<8x128xf32>
    %c128_i32 = arith.constant 128 : i32
    %6 = arith.muli %arg0, %c128_i32 : i32
    %7 = tpu.iota {dimensions = array<i32: 1>} : vector<8x128xi32>
    %8 = vector.broadcast %6 : i32 to vector<8x128xi32>
    %9 = arith.addi %8, %7 : vector<8x128xi32>
    %c520_i32 = arith.constant 520 : i32
    %10 = vector.broadcast %c520_i32 : i32 to vector<8x128xi32>
    %11 = arith.cmpi slt, %9, %10 : vector<8x128xi32>
    %cst_4 = arith.constant 0xFF800000 : f32
    %12 = vector.broadcast %cst_4 : f32 to vector<8x128xf32>
    %13 = arith.select %11, %5, %12 : vector<8x128xi1>, vector<8x128xf32>
    %c0_5 = arith.constant 0 : index
    %c0_6 = arith.constant 0 : index
    %14 = vector.load %arg4[%c0_5, %c0_6] : memref<8x128xf32, #tpu.memory_space<vmem>>, vector<8x128xf32>
    %15 = tpu.concatenate %14, %13 in 1 : vector<8x128xf32>, vector<8x128xf32> -> vector<8x256xf32>
    %c0_7 = arith.constant 0 : index
    %c0_8 = arith.constant 0 : index
    %16 = vector.load %arg5[%c0_7, %c0_8] : memref<8x128xi32, #tpu.memory_space<vmem>>, vector<8x128xi32>
    %17 = tpu.concatenate %16, %9 in 1 : vector<8x128xi32>, vector<8x128xi32> -> vector<8x256xi32>
    %cst_9 = arith.constant dense<0xFF800000> : vector<8xf32>
    %18 = vector.multi_reduction <maximumf>, %15, %cst_9 [1] : vector<8x256xf32> to vector<8xf32>
    %19 = vector.shape_cast %18 : vector<8xf32> to vector<8x1xf32>
    %20 = vector.broadcast %19 : vector<8x1xf32> to vector<8x256xf32>
    %21 = arith.cmpf oeq, %15, %20 : vector<8x256xf32>
    %c776_i32 = arith.constant 776 : i32
    %22 = vector.broadcast %c776_i32 : i32 to vector<8x256xi32>
    %23 = arith.select %21, %17, %22 : vector<8x256xi1>, vector<8x256xi32>
    %cst_10 = arith.constant dense<2147483647> : vector<8xi32>
    %24 = vector.multi_reduction <minsi>, %23, %cst_10 [1] : vector<8x256xi32> to vector<8xi32>
    %25 = vector.shape_cast %24 : vector<8xi32> to vector<8x1xi32>
    %c0_11 = arith.constant 0 : index
    %c0_12 = arith.constant 0 : index
    %26 = vector.load %arg4[%c0_11, %c0_12] : memref<8x128xf32, #tpu.memory_space<vmem>>, vector<8x1xf32>
    tpu.vector_store %arg4[%c0_11, %c0_12], %19 {strides = array<i32>} : memref<8x128xf32, #tpu.memory_space<vmem>>, vector<8x1xf32>,
    %c0_13 = arith.constant 0 : index
    %c0_14 = arith.constant 0 : index
    %27 = vector.load %arg5[%c0_13, %c0_14] : memref<8x128xi32, #tpu.memory_space<vmem>>, vector<8x1xi32>
    tpu.vector_store %arg5[%c0_13, %c0_14], %25 {strides = array<i32>} : memref<8x128xi32, #tpu.memory_space<vmem>>, vector<8x1xi32>,
    %c0_15 = arith.constant 0 : index
    %c0_16 = arith.constant 0 : index
    %28 = vector.load %arg3[%c0_15, %c0_16] : memref<8x128xi32, #tpu.memory_space<vmem>>, vector<8x1xi32>
    tpu.vector_store %arg3[%c0_15, %c0_16], %25 {strides = array<i32>} : memref<8x128xi32, #tpu.memory_space<vmem>>, vector<8x1xi32>,
    %29 = vector.broadcast %25 : vector<8x1xi32> to vector<8x256xi32>
    %30 = arith.cmpi eq, %17, %29 : vector<8x256xi32>
    %31 = arith.andi %21, %30 : vector<8x256xi1>
    %cst_17 = arith.constant 0xFF800000 : f32
    %32 = vector.broadcast %cst_17 : f32 to vector<8x256xf32>
    %33 = arith.select %31, %32, %15 : vector<8x256xi1>, vector<8x256xf32>
    %cst_18 = arith.constant dense<0xFF800000> : vector<8xf32>
    %34 = vector.multi_reduction <maximumf>, %33, %cst_18 [1] : vector<8x256xf32> to vector<8xf32>
    %35 = vector.shape_cast %34 : vector<8xf32> to vector<8x1xf32>
    %36 = vector.broadcast %35 : vector<8x1xf32> to vector<8x256xf32>
    %37 = arith.cmpf oeq, %33, %36 : vector<8x256xf32>
    %c776_i32_19 = arith.constant 776 : i32
    %38 = vector.broadcast %c776_i32_19 : i32 to vector<8x256xi32>
    %39 = arith.select %37, %17, %38 : vector<8x256xi1>, vector<8x256xi32>
    %cst_20 = arith.constant dense<2147483647> : vector<8xi32>
    %40 = vector.multi_reduction <minsi>, %39, %cst_20 [1] : vector<8x256xi32> to vector<8xi32>
    %41 = vector.shape_cast %40 : vector<8xi32> to vector<8x1xi32>
    %c0_21 = arith.constant 0 : index
    %c1 = arith.constant 1 : index
    %42 = vector.load %arg4[%c0_21, %c1] : memref<8x128xf32, #tpu.memory_space<vmem>>, vector<8x1xf32>
    tpu.vector_store %arg4[%c0_21, %c1], %35 {strides = array<i32>} : memref<8x128xf32, #tpu.memory_space<vmem>>, vector<8x1xf32>,
    %c0_22 = arith.constant 0 : index
    %c1_23 = arith.constant 1 : index
    %43 = vector.load %arg5[%c0_22, %c1_23] : memref<8x128xi32, #tpu.memory_space<vmem>>, vector<8x1xi32>
    tpu.vector_store %arg5[%c0_22, %c1_23], %41 {strides = array<i32>} : memref<8x128xi32, #tpu.memory_space<vmem>>, vector<8x1xi32>,
    %c0_24 = arith.constant 0 : index
    %c1_25 = arith.constant 1 : index
    %44 = vector.load %arg3[%c0_24, %c1_25] : memref<8x128xi32, #tpu.memory_space<vmem>>, vector<8x1xi32>
    tpu.vector_store %arg3[%c0_24, %c1_25], %41 {strides = array<i32>} : memref<8x128xi32, #tpu.memory_space<vmem>>, vector<8x1xi32>,
    %45 = vector.broadcast %41 : vector<8x1xi32> to vector<8x256xi32>
    %46 = arith.cmpi eq, %17, %45 : vector<8x256xi32>
    %47 = arith.andi %37, %46 : vector<8x256xi1>
    %cst_26 = arith.constant 0xFF800000 : f32
    %48 = vector.broadcast %cst_26 : f32 to vector<8x256xf32>
    %49 = arith.select %47, %48, %33 : vector<8x256xi1>, vector<8x256xf32>
    %cst_27 = arith.constant dense<0xFF800000> : vector<8xf32>
    %50 = vector.multi_reduction <maximumf>, %49, %cst_27 [1] : vector<8x256xf32> to vector<8xf32>
    %51 = vector.shape_cast %50 : vector<8xf32> to vector<8x1xf32>
    %52 = vector.broadcast %51 : vector<8x1xf32> to vector<8x256xf32>
    %53 = arith.cmpf oeq, %49, %52 : vector<8x256xf32>
    %c776_i32_28 = arith.constant 776 : i32
    %54 = vector.broadcast %c776_i32_28 : i32 to vector<8x256xi32>
    %55 = arith.select %53, %17, %54 : vector<8x256xi1>, vector<8x256xi32>
    %cst_29 = arith.constant dense<2147483647> : vector<8xi32>
    %56 = vector.multi_reduction <minsi>, %55, %cst_29 [1] : vector<8x256xi32> to vector<8xi32>
    %57 = vector.shape_cast %56 : vector<8xi32> to vector<8x1xi32>
    %c0_30 = arith.constant 0 : index
    %c2 = arith.constant 2 : index
    %58 = vector.load %arg4[%c0_30, %c2] : memref<8x128xf32, #tpu.memory_space<vmem>>, vector<8x1xf32>
    tpu.vector_store %arg4[%c0_30, %c2], %51 {strides = array<i32>} : memref<8x128xf32, #tpu.memory_space<vmem>>, vector<8x1xf32>,
    %c0_31 = arith.constant 0 : index
    %c2_32 = arith.constant 2 : index
    %59 = vector.load %arg5[%c0_31, %c2_32] : memref<8x128xi32, #tpu.memory_space<vmem>>, vector<8x1xi32>
    tpu.vector_store %arg5[%c0_31, %c2_32], %57 {strides = array<i32>} : memref<8x128xi32, #tpu.memory_space<vmem>>, vector<8x1xi32>,
    %c0_33 = arith.constant 0 : index
    %c2_34 = arith.constant 2 : index
    %60 = vector.load %arg3[%c0_33, %c2_34] : memref<8x128xi32, #tpu.memory_space<vmem>>, vector<8x1xi32>
    tpu.vector_store %arg3[%c0_33, %c2_34], %57 {strides = array<i32>} : memref<8x128xi32, #tpu.memory_space<vmem>>, vector<8x1xi32>,
    %61 = vector.broadcast %57 : vector<8x1xi32> to vector<8x256xi32>
    %62 = arith.cmpi eq, %17, %61 : vector<8x256xi32>
    %63 = arith.andi %53, %62 : vector<8x256xi1>
    %cst_35 = arith.constant 0xFF800000 : f32
    %64 = vector.broadcast %cst_35 : f32 to vector<8x256xf32>
    %65 = arith.select %63, %64, %49 : vector<8x256xi1>, vector<8x256xf32>
    %cst_36 = arith.constant dense<0xFF800000> : vector<8xf32>
    %66 = vector.multi_reduction <maximumf>, %65, %cst_36 [1] : vector<8x256xf32> to vector<8xf32>
    %67 = vector.shape_cast %66 : vector<8xf32> to vector<8x1xf32>
    %68 = vector.broadcast %67 : vector<8x1xf32> to vector<8x256xf32>
    %69 = arith.cmpf oeq, %65, %68 : vector<8x256xf32>
    %c776_i32_37 = arith.constant 776 : i32
    %70 = vector.broadcast %c776_i32_37 : i32 to vector<8x256xi32>
    %71 = arith.select %69, %17, %70 : vector<8x256xi1>, vector<8x256xi32>
    %cst_38 = arith.constant dense<2147483647> : vector<8xi32>
    %72 = vector.multi_reduction <minsi>, %71, %cst_38 [1] : vector<8x256xi32> to vector<8xi32>
    %73 = vector.shape_cast %72 : vector<8xi32> to vector<8x1xi32>
    %c0_39 = arith.constant 0 : index
    %c3 = arith.constant 3 : index
    %74 = vector.load %arg4[%c0_39, %c3] : memref<8x128xf32, #tpu.memory_space<vmem>>, vector<8x1xf32>
    tpu.vector_store %arg4[%c0_39, %c3], %67 {strides = array<i32>} : memref<8x128xf32, #tpu.memory_space<vmem>>, vector<8x1xf32>,
    %c0_40 = arith.constant 0 : index
    %c3_41 = arith.constant 3 : index
    %75 = vector.load %arg5[%c0_40, %c3_41] : memref<8x128xi32, #tpu.memory_space<vmem>>, vector<8x1xi32>
    tpu.vector_store %arg5[%c0_40, %c3_41], %73 {strides = array<i32>} : memref<8x128xi32, #tpu.memory_space<vmem>>, vector<8x1xi32>,
    %c0_42 = arith.constant 0 : index
    %c3_43 = arith.constant 3 : index
    %76 = vector.load %arg3[%c0_42, %c3_43] : memref<8x128xi32, #tpu.memory_space<vmem>>, vector<8x1xi32>
    tpu.vector_store %arg3[%c0_42, %c3_43], %73 {strides = array<i32>} : memref<8x128xi32, #tpu.memory_space<vmem>>, vector<8x1xi32>,
    %77 = vector.broadcast %73 : vector<8x1xi32> to vector<8x256xi32>
    %78 = arith.cmpi eq, %17, %77 : vector<8x256xi32>
    %79 = arith.andi %69, %78 : vector<8x256xi1>
    %cst_44 = arith.constant 0xFF800000 : f32
    %80 = vector.broadcast %cst_44 : f32 to vector<8x256xf32>
    %81 = arith.select %79, %80, %65 : vector<8x256xi1>, vector<8x256xf32>
    %cst_45 = arith.constant dense<0xFF800000> : vector<8xf32>
    %82 = vector.multi_reduction <maximumf>, %81, %cst_45 [1] : vector<8x256xf32> to vector<8xf32>
    %83 = vector.shape_cast %82 : vector<8xf32> to vector<8x1xf32>
    %84 = vector.broadcast %83 : vector<8x1xf32> to vector<8x256xf32>
    %85 = arith.cmpf oeq, %81, %84 : vector<8x256xf32>
    %c776_i32_46 = arith.constant 776 : i32
    %86 = vector.broadcast %c776_i32_46 : i32 to vector<8x256xi32>
    %87 = arith.select %85, %17, %86 : vector<8x256xi1>, vector<8x256xi32>
    %cst_47 = arith.constant dense<2147483647> : vector<8xi32>
    %88 = vector.multi_reduction <minsi>, %87, %cst_47 [1] : vector<8x256xi32> to vector<8xi32>
    %89 = vector.shape_cast %88 : vector<8xi32> to vector<8x1xi32>
    %c0_48 = arith.constant 0 : index
    %c4 = arith.constant 4 : index
    %90 = vector.load %arg4[%c0_48, %c4] : memref<8x128xf32, #tpu.memory_space<vmem>>, vector<8x1xf32>
    tpu.vector_store %arg4[%c0_48, %c4], %83 {strides = array<i32>} : memref<8x128xf32, #tpu.memory_space<vmem>>, vector<8x1xf32>,
    %c0_49 = arith.constant 0 : index
    %c4_50 = arith.constant 4 : index
    %91 = vector.load %arg5[%c0_49, %c4_50] : memref<8x128xi32, #tpu.memory_space<vmem>>, vector<8x1xi32>
    tpu.vector_store %arg5[%c0_49, %c4_50], %89 {strides = array<i32>} : memref<8x128xi32, #tpu.memory_space<vmem>>, vector<8x1xi32>,
    %c0_51 = arith.constant 0 : index
    %c4_52 = arith.constant 4 : index
    %92 = vector.load %arg3[%c0_51, %c4_52] : memref<8x128xi32, #tpu.memory_space<vmem>>, vector<8x1xi32>
    tpu.vector_store %arg3[%c0_51, %c4_52], %89 {strides = array<i32>} : memref<8x128xi32, #tpu.memory_space<vmem>>, vector<8x1xi32>,
    %93 = vector.broadcast %89 : vector<8x1xi32> to vector<8x256xi32>
    %94 = arith.cmpi eq, %17, %93 : vector<8x256xi32>
    %95 = arith.andi %85, %94 : vector<8x256xi1>
    %cst_53 = arith.constant 0xFF800000 : f32
    %96 = vector.broadcast %cst_53 : f32 to vector<8x256xf32>
    %97 = arith.select %95, %96, %81 : vector<8x256xi1>, vector<8x256xf32>
    %cst_54 = arith.constant dense<0xFF800000> : vector<8xf32>
    %98 = vector.multi_reduction <maximumf>, %97, %cst_54 [1] : vector<8x256xf32> to vector<8xf32>
    %99 = vector.shape_cast %98 : vector<8xf32> to vector<8x1xf32>
    %100 = vector.broadcast %99 : vector<8x1xf32> to vector<8x256xf32>
    %101 = arith.cmpf oeq, %97, %100 : vector<8x256xf32>
    %c776_i32_55 = arith.constant 776 : i32
    %102 = vector.broadcast %c776_i32_55 : i32 to vector<8x256xi32>
    %103 = arith.select %101, %17, %102 : vector<8x256xi1>, vector<8x256xi32>
    %cst_56 = arith.constant dense<2147483647> : vector<8xi32>
    %104 = vector.multi_reduction <minsi>, %103, %cst_56 [1] : vector<8x256xi32> to vector<8xi32>
    %105 = vector.shape_cast %104 : vector<8xi32> to vector<8x1xi32>
    %c0_57 = arith.constant 0 : index
    %c5 = arith.constant 5 : index
    %106 = vector.load %arg4[%c0_57, %c5] : memref<8x128xf32, #tpu.memory_space<vmem>>, vector<8x1xf32>
    tpu.vector_store %arg4[%c0_57, %c5], %99 {strides = array<i32>} : memref<8x128xf32, #tpu.memory_space<vmem>>, vector<8x1xf32>,
    %c0_58 = arith.constant 0 : index
    %c5_59 = arith.constant 5 : index
    %107 = vector.load %arg5[%c0_58, %c5_59] : memref<8x128xi32, #tpu.memory_space<vmem>>, vector<8x1xi32>
    tpu.vector_store %arg5[%c0_58, %c5_59], %105 {strides = array<i32>} : memref<8x128xi32, #tpu.memory_space<vmem>>, vector<8x1xi32>,
    %c0_60 = arith.constant 0 : index
    %c5_61 = arith.constant 5 : index
    %108 = vector.load %arg3[%c0_60, %c5_61] : memref<8x128xi32, #tpu.memory_space<vmem>>, vector<8x1xi32>
    tpu.vector_store %arg3[%c0_60, %c5_61], %105 {strides = array<i32>} : memref<8x128xi32, #tpu.memory_space<vmem>>, vector<8x1xi32>,
    %109 = vector.broadcast %105 : vector<8x1xi32> to vector<8x256xi32>
    %110 = arith.cmpi eq, %17, %109 : vector<8x256xi32>
    %111 = arith.andi %101, %110 : vector<8x256xi1>
    %cst_62 = arith.constant 0xFF800000 : f32
    %112 = vector.broadcast %cst_62 : f32 to vector<8x256xf32>
    %113 = arith.select %111, %112, %97 : vector<8x256xi1>, vector<8x256xf32>
    %cst_63 = arith.constant dense<0xFF800000> : vector<8xf32>
    %114 = vector.multi_reduction <maximumf>, %113, %cst_63 [1] : vector<8x256xf32> to vector<8xf32>
    %115 = vector.shape_cast %114 : vector<8xf32> to vector<8x1xf32>
    %116 = vector.broadcast %115 : vector<8x1xf32> to vector<8x256xf32>
    %117 = arith.cmpf oeq, %113, %116 : vector<8x256xf32>
    %c776_i32_64 = arith.constant 776 : i32
    %118 = vector.broadcast %c776_i32_64 : i32 to vector<8x256xi32>
    %119 = arith.select %117, %17, %118 : vector<8x256xi1>, vector<8x256xi32>
    %cst_65 = arith.constant dense<2147483647> : vector<8xi32>
    %120 = vector.multi_reduction <minsi>, %119, %cst_65 [1] : vector<8x256xi32> to vector<8xi32>
    %121 = vector.shape_cast %120 : vector<8xi32> to vector<8x1xi32>
    %c0_66 = arith.constant 0 : index
    %c6 = arith.constant 6 : index
    %122 = vector.load %arg4[%c0_66, %c6] : memref<8x128xf32, #tpu.memory_space<vmem>>, vector<8x1xf32>
    tpu.vector_store %arg4[%c0_66, %c6], %115 {strides = array<i32>} : memref<8x128xf32, #tpu.memory_space<vmem>>, vector<8x1xf32>,
    %c0_67 = arith.constant 0 : index
    %c6_68 = arith.constant 6 : index
    %123 = vector.load %arg5[%c0_67, %c6_68] : memref<8x128xi32, #tpu.memory_space<vmem>>, vector<8x1xi32>
    tpu.vector_store %arg5[%c0_67, %c6_68], %121 {strides = array<i32>} : memref<8x128xi32, #tpu.memory_space<vmem>>, vector<8x1xi32>,
    %c0_69 = arith.constant 0 : index
    %c6_70 = arith.constant 6 : index
    %124 = vector.load %arg3[%c0_69, %c6_70] : memref<8x128xi32, #tpu.memory_space<vmem>>, vector<8x1xi32>
    tpu.vector_store %arg3[%c0_69, %c6_70], %121 {strides = array<i32>} : memref<8x128xi32, #tpu.memory_space<vmem>>, vector<8x1xi32>,
    %125 = vector.broadcast %121 : vector<8x1xi32> to vector<8x256xi32>
    %126 = arith.cmpi eq, %17, %125 : vector<8x256xi32>
    %127 = arith.andi %117, %126 : vector<8x256xi1>
    %cst_71 = arith.constant 0xFF800000 : f32
    %128 = vector.broadcast %cst_71 : f32 to vector<8x256xf32>
    %129 = arith.select %127, %128, %113 : vector<8x256xi1>, vector<8x256xf32>
    %cst_72 = arith.constant dense<0xFF800000> : vector<8xf32>
    %130 = vector.multi_reduction <maximumf>, %129, %cst_72 [1] : vector<8x256xf32> to vector<8xf32>
    %131 = vector.shape_cast %130 : vector<8xf32> to vector<8x1xf32>
    %132 = vector.broadcast %131 : vector<8x1xf32> to vector<8x256xf32>
    %133 = arith.cmpf oeq, %129, %132 : vector<8x256xf32>
    %c776_i32_73 = arith.constant 776 : i32
    %134 = vector.broadcast %c776_i32_73 : i32 to vector<8x256xi32>
    %135 = arith.select %133, %17, %134 : vector<8x256xi1>, vector<8x256xi32>
    %cst_74 = arith.constant dense<2147483647> : vector<8xi32>
    %136 = vector.multi_reduction <minsi>, %135, %cst_74 [1] : vector<8x256xi32> to vector<8xi32>
    %137 = vector.shape_cast %136 : vector<8xi32> to vector<8x1xi32>
    %c0_75 = arith.constant 0 : index
    %c7 = arith.constant 7 : index
    %138 = vector.load %arg4[%c0_75, %c7] : memref<8x128xf32, #tpu.memory_space<vmem>>, vector<8x1xf32>
    tpu.vector_store %arg4[%c0_75, %c7], %131 {strides = array<i32>} : memref<8x128xf32, #tpu.memory_space<vmem>>, vector<8x1xf32>,
    %c0_76 = arith.constant 0 : index
    %c7_77 = arith.constant 7 : index
    %139 = vector.load %arg5[%c0_76, %c7_77] : memref<8x128xi32, #tpu.memory_space<vmem>>, vector<8x1xi32>
    tpu.vector_store %arg5[%c0_76, %c7_77], %137 {strides = array<i32>} : memref<8x128xi32, #tpu.memory_space<vmem>>, vector<8x1xi32>,
    %c0_78 = arith.constant 0 : index
    %c7_79 = arith.constant 7 : index
    %140 = vector.load %arg3[%c0_78, %c7_79] : memref<8x128xi32, #tpu.memory_space<vmem>>, vector<8x1xi32>
    tpu.vector_store %arg3[%c0_78, %c7_79], %137 {strides = array<i32>} : memref<8x128xi32, #tpu.memory_space<vmem>>, vector<8x1xi32>,
    return
  }
  func.func @transform_0(%arg0: i32) -> (i32, i32) {
    %c0_i32 = arith.constant 0 : i32
    %c0_i32_0 = arith.constant 0 : i32
    %c0_i32_1 = arith.constant 0 : i32
    return %c0_i32, %c0_i32_0 : i32, i32
  }
  func.func @transform_1(%arg0: i32) -> (i32, i32) {
    %c0_i32 = arith.constant 0 : i32
    %c0_i32_0 = arith.constant 0 : i32
    return %arg0, %c0_i32 : i32, i32
  }
  func.func @transform_2(%arg0: i32) -> (i32, i32) {
    %c0_i32 = arith.constant 0 : i32
    %c0_i32_0 = arith.constant 0 : i32
    %c0_i32_1 = arith.constant 0 : i32
    return %c0_i32, %c0_i32_0 : i32, i32
  }
}

</mosaic_0001>

<llo_original>
// kernel: tpu_custom_call.1
$region0: #{tpu_custom_call.1}
  #allocation0 [shape = 'u32[]', space=smem, size = 0x4, offset = 0x4, fixed_abs, tag = 'smem constant byte address 0x4 - core index']
  #allocation1 [shape = 'u32[144,128]{1,0:T(1,128)}', space=vmem, size = 0x12000, scoped, tag = 'internal scratch']
  #allocation2 [shape = 'f32[8,128]{1,0:T(8,128)}', space=vmem, size = 0x1000, scoped, tag = 'scratch operand']
  #allocation3 [shape = 's32[8,128]{1,0:T(8,128)}', space=vmem, size = 0x1000, scoped, tag = 'scratch operand']
  %s0 = inlined_call_operand.hbm [shape: f32[8,128], index: 0, kind: input, shape index: {}]
  %s1 = inlined_call_operand.hbm [shape: f32[520,128], index: 1, kind: input, shape index: {}]
  %s2 = inlined_call_operand.hbm [shape: s32[8,128], index: 2, kind: output, shape index: {}]
  %s3 = sld [smem:[#allocation0]]
  $region53: #{tpu_custom_call.1} parent=0
    _
  %s5 = ssub.s32 1, %s3
  %s6 = scalar_select 0, %s5, %s3
  $region1: #{tpu_custom_call.1} parent=0
    #allocation4 [shape = 'u8[4096]{0}', space=vmem, size = 0x1000, scoped, tag = 'input window, operand 0, single buffered']
    #allocation5 [shape = 's32[2]{0}', space=sflag, size = 0x8, scoped, tag = 'scoped memory for tpu_custom_call.1']
    #allocation6 [shape = 's32[2]{0}', space=sflag, size = 0x8, scoped, tag = 'scoped memory for tpu_custom_call.1']
    #allocation7 [shape = 'u8[131072]{0}', space=vmem, size = 0x20000, scoped, tag = 'input window, operand 1']
    #allocation8 [shape = 's32[2]{0}', space=sflag, size = 0x8, scoped, tag = 'scoped memory for tpu_custom_call.1']
    #allocation9 [shape = 'u8[4096]{0}', space=vmem, size = 0x1000, scoped, tag = 'output window, operand 0, single buffered']
    %7 = vsyncpa [#allocation5], 0
    %8 = vsyncpa [#allocation8], 0
    %s9 = scalar_lea.sflag [#allocation8], 1
    %10 = vsyncpa %s9, 0
    %11 = vsyncpa [#allocation6], 0
    loop: start=0, step=1, limit=7
    $region2: #{tpu_custom_call.1} parent=1 // loop_pre_header
      _
    $region3: #{tpu_custom_call.1} parent=1 // loop_header
      %s13 = sphi 0, %s17
      %p14 = scmp.ge.s32.totalorder %s13, 7
      %s21 = sphi 0, %s21
      %s23 = sphi 0, %s21
      %s24 = sphi 0, %s23
      %s38 = sphi 0, %s24
      %s44 = sphi 0, %s46
      %s47 = sphi 0, %s44
      %s48 = sphi 0, %s47
      %s64 = sphi 0, %s48
      %s68 = sphi 0, %s68
      %s70 = sphi 0, %s68
      %s71 = sphi 0, %s70
      %s85 = sphi 0, %s71
    $region4: #{tpu_custom_call.1} parent=1 // loop_header_branch
      %16 = sbr.rel (%p14) target = $region8
    $region5: #{tpu_custom_call.1} parent=1 // loop_body
      %s18 = ssub.s32 %s13, 1
      %s19 = ssub.s32 %s13, 2
      %s20 = sadd.s32 %s13, 1
      %s22 = sadd.s32 %s21, 1
      %p25 = scmp.eq.s32.totalorder %s13, 4
      %p26 = scmp.ne.s32.totalorder %s21, %s23
      %p27 = scmp.eq.s32.totalorder %s13, 0
      %p28 = por %p26, %p27
      %p29 = scmp.ne.s32.totalorder %s21, %s23
      %p30 = scmp.eq.s32.totalorder %s18, 4
      %p31 = por %p29, %p30
      %p32 = scmp.ne.s32.totalorder %s23, %s24
      %p33 = scmp.eq.s32.totalorder %s18, 0
      %p34 = por %p32, %p33
      %p35 = scmp.ne.s32.totalorder %s23, %s24
      %p36 = scmp.eq.s32.totalorder %s19, 4
      %p37 = por %p35, %p36
      %p39 = scmp.ne.s32.totalorder %s24, %s38
      %p40 = scmp.eq.s32.totalorder %s19, 0
      %p41 = por %p39, %p40
      %s42 = ssub.s32 %s13, %s20
      %p43 = scmp.eq.s32.totalorder %s42, 0
      %s45 = sadd.s32 %s44, 1
      %s46 = scalar_select %p43, %s44, %s45
      %p49 = pneg %p43
      %p50 = scmp.eq.s32.totalorder %s13, 4
      %p51 = por %p49, %p50
      %p52 = scmp.ne.s32.totalorder %s44, %s47
      %p53 = scmp.eq.s32.totalorder %s13, 0
      %p54 = por %p52, %p53
      %p55 = scmp.ne.s32.totalorder %s44, %s47
      %p56 = scmp.eq.s32.totalorder %s18, 4
      %p57 = por %p55, %p56
      %p58 = scmp.ne.s32.totalorder %s47, %s48
      %p59 = scmp.eq.s32.totalorder %s18, 0
      %p60 = por %p58, %p59
      %p61 = scmp.ne.s32.totalorder %s47, %s48
      %p62 = scmp.eq.s32.totalorder %s19, 4
      %p63 = por %p61, %p62
      %p65 = scmp.ne.s32.totalorder %s48, %s64
      %p66 = scmp.eq.s32.totalorder %s19, 0
      %p67 = por %p65, %p66
      %s69 = sadd.s32 %s68, 1
      %p72 = scmp.eq.s32.totalorder %s13, 4
      %p73 = scmp.ne.s32.totalorder %s68, %s70
      %p74 = scmp.eq.s32.totalorder %s13, 0
      %p75 = por %p73, %p74
      %p76 = scmp.ne.s32.totalorder %s68, %s70
      %p77 = scmp.eq.s32.totalorder %s18, 4
      %p78 = por %p76, %p77
      %p79 = scmp.ne.s32.totalorder %s70, %s71
      %p80 = scmp.eq.s32.totalorder %s18, 0
      %p81 = por %p79, %p80
      %p82 = scmp.ne.s32.totalorder %s70, %s71
      %p83 = scmp.eq.s32.totalorder %s19, 4
      %p84 = por %p82, %p83
      %p86 = scmp.ne.s32.totalorder %s71, %s85
      %p87 = scmp.eq.s32.totalorder %s19, 0
      %p88 = por %p86, %p87
      %p89 = scmp.le.s32.totalorder 1, %s13
      %p90 = scmp.lt.s32.totalorder %s13, 6
      %p91 = pnand %p89, %p90
      %p92 = pneg %p91
      // Predicated region
      $region9: #{tpu_custom_call.1} parent=5 // pred_check
        _
      $region10: #{tpu_custom_call.1} parent=5 // pred_check_branch
        %94 = sbr.rel (%p91) target = $region12
      $region11: #{tpu_custom_call.1} parent=5 // pred_region
        %s95 = ssub.s32 %s13, 1
        // Predicated region
        $region13: #{tpu_custom_call.1} parent=11 // pred_check
          %p96 = pneg %p34
        $region14: #{tpu_custom_call.1} parent=11 // pred_check_branch
          %98 = sbr.rel (%p96) target = $region16
        $region15: #{tpu_custom_call.1} parent=11 // pred_region
          %s100 = ssub.s32 128, 128
          %101 = vsyncadd [#allocation5], %s100
          %s103 = sshll.u32 [#allocation4], 4
          %s104 = int_to_ptr.vmem [resolvable:$true] %s103
          %106 = dma.hbm_to_vmem [thread:$0]  %s0, 128, %s104, [#allocation5]
        $region16: #{tpu_custom_call.1} parent=11 // pred_fallthru
          _
      $region12: #{tpu_custom_call.1} parent=5 // pred_fallthru
        _
      %p107 = scmp.lt.s32.totalorder %s13, 5
      // Predicated region
      $region17: #{tpu_custom_call.1} parent=5 // pred_check
        %p108 = pneg %p107
      $region18: #{tpu_custom_call.1} parent=5 // pred_check_branch
        %110 = sbr.rel (%p108) target = $region20
      $region19: #{tpu_custom_call.1} parent=5 // pred_region
        // Predicated region
        $region21: #{tpu_custom_call.1} parent=19 // pred_check
          %p111 = pneg %p54
        $region22: #{tpu_custom_call.1} parent=19 // pred_check_branch
          %113 = sbr.rel (%p111) target = $region24
        $region23: #{tpu_custom_call.1} parent=19 // pred_region
          %s114 = sand.u32 %s44, 1
          %s115 = scalar_lea.sflag [#allocation8], %s114
          %s116 = sand.u32 %s44, 1
          %s117 = smul.addr %s116, 128
          %s118 = scalar_lea.vmem [#allocation7], %s117
          %s119 = smul.u32 16, %s13
          %s120 = ssub.s32 65, %s119
          %p121 = scmp.lt.s32.totalorder %s120, 16
          %s122 = scalar_select %p121, %s120, 16
          %s123 = smul.u32 128, %s122
          %s125 = ssub.s32 2048, %s123
          %126 = vsyncadd %s115, %s125
          %p127 = scmp.ne.s32.totalorder 0, %s123
          %s128 = smul.addr %s119, 128
          %s129 = scalar_lea.hbm %s1, %s128
          %s130 = smul.u32 8, %s122
          %s131 = sshll.u32 %s118, 4
          %s132 = int_to_ptr.vmem [resolvable:$true] %s131
          %s133 = sshll.u32 %s130, 4
          %137 = dma.hbm_to_vmem [thread:$0]  (%p127), %s129, %s133, %s132, %s115, 128, 128, 8
        $region24: #{tpu_custom_call.1} parent=19 // pred_fallthru
          _
      $region20: #{tpu_custom_call.1} parent=5 // pred_fallthru
        _
      %p138 = scmp.le.s32.totalorder 1, %s13
      %p139 = scmp.lt.s32.totalorder %s13, 6
      %p140 = pnand %p138, %p139
      %p141 = pneg %p140
      // Predicated region
      $region25: #{tpu_custom_call.1} parent=5 // pred_check
        _
      $region26: #{tpu_custom_call.1} parent=5 // pred_check_branch
        %143 = sbr.rel (%p140) target = $region28
      $region27: #{tpu_custom_call.1} parent=5 // pred_region
        %s144 = ssub.s32 %s13, 1
        // Predicated region
        $region29: #{tpu_custom_call.1} parent=27 // pred_check
          %p145 = pneg %p34
        $region30: #{tpu_custom_call.1} parent=27 // pred_check_branch
          %147 = sbr.rel (%p145) target = $region32
        $region31: #{tpu_custom_call.1} parent=27 // pred_region
          %148 = dma.done [#allocation5], 128
        $region32: #{tpu_custom_call.1} parent=27 // pred_fallthru
          _
        %s149 = sand.u32 %s47, 1
        %s150 = scalar_lea.sflag [#allocation8], %s149
        %s151 = sand.u32 %s47, 1
        %s152 = smul.addr %s151, 128
        %s153 = scalar_lea.vmem [#allocation7], %s152
        // Predicated region
        $region33: #{tpu_custom_call.1} parent=27 // pred_check
          %p154 = pneg %p60
        $region34: #{tpu_custom_call.1} parent=27 // pred_check_branch
          %156 = sbr.rel (%p154) target = $region36
        $region35: #{tpu_custom_call.1} parent=27 // pred_region
          %157 = dma.done %s150, 2048
        $region36: #{tpu_custom_call.1} parent=27 // pred_fallthru
          _
        %p158 = pneg %p34
        %p159 = pneg %p31
        %s160 = sand.u32 %s47, 1
        %s161 = scalar_lea.sflag [#allocation8], %s160
        %s162 = sand.u32 %s47, 1
        %s163 = smul.addr %s162, 128
        %s164 = scalar_lea.vmem [#allocation7], %s163
        %p165 = pneg %p60
        %p166 = pneg %p57
        %p167 = pneg %p81
        %p168 = pneg %p78
        %s169 = smul.u32 16, %s18
        %s170 = ssub.s32 65, %s169
        %p171 = scmp.lt.s32.totalorder %s170, 16
        %s172 = scalar_select %p171, %s170, 16
        %s173 = smul.u32 128, %s172
        %p174 = scmp.eq.s32.totalorder %s18, 0
        // Predicated region
        $region37: #{tpu_custom_call.1} parent=27 // pred_check
          %p175 = pneg %p174
        $region38: #{tpu_custom_call.1} parent=27 // pred_check_branch
          %177 = sbr.rel (%p175) target = $region40
        $region39: #{tpu_custom_call.1} parent=27 // pred_region
          %178 = vst [vmem:[#allocation2] sm:$0xff] -inf
          %179 = vst [vmem:[#allocation3] sm:$0xff] 0
          %180 = vst [vmem:[#allocation9] sm:$0xff] 0
        $region40: #{tpu_custom_call.1} parent=27 // pred_fallthru
          _
        %v181 = vld [vmem:[#allocation4] sm:$0xff]
        %v182 = vld [vmem:[%s153] sm:$0xff]
        %v183 = vld [vmem:[%s153 + $0x8] sm:$0xff]
        %v184 = vld [vmem:[%s153 + $0x10] sm:$0xff]
        %v185 = vld [vmem:[%s153 + $0x18] sm:$0xff]
        %v186 = vld [vmem:[%s153 + $0x20] sm:$0xff]
        %v187 = vld [vmem:[%s153 + $0x28] sm:$0xff]
        %v188 = vld [vmem:[%s153 + $0x30] sm:$0xff]
        %v189 = vld [vmem:[%s153 + $0x38] sm:$0xff]
        %v190 = vld [vmem:[%s153 + $0x40] sm:$0xff]
        %v191 = vld [vmem:[%s153 + $0x48] sm:$0xff]
        %v192 = vld [vmem:[%s153 + $0x50] sm:$0xff]
        %v193 = vld [vmem:[%s153 + $0x58] sm:$0xff]
        %v194 = vld [vmem:[%s153 + $0x60] sm:$0xff]
        %v195 = vld [vmem:[%s153 + $0x68] sm:$0xff]
        %v196 = vld [vmem:[%s153 + $0x70] sm:$0xff]
        %v197 = vld [vmem:[%s153 + $0x78] sm:$0xff]
        %198 = vmatprep.subr.mxu0 0.0
        %199 = vmatpush1.xpose.msra.mxu0 %v197
        %200 = vmatprep.subr.mxu0 0.0
        %201 = vmatpush1.xpose.msra.mxu0 %v196
        %202 = vmatprep.subr.mxu0 0.0
        %203 = vmatpush1.xpose.msra.mxu0 %v195
        %204 = vmatprep.subr.mxu0 0.0
        %205 = vmatpush1.xpose.msra.mxu0 %v194
        %206 = vmatprep.subr.mxu0 0.0
        %207 = vmatpush1.xpose.msra.mxu0 %v193
        %208 = vmatprep.subr.mxu0 0.0
        %209 = vmatpush1.xpose.msra.mxu0 %v192
        %210 = vmatprep.subr.mxu0 0.0
        %211 = vmatpush1.xpose.msra.mxu0 %v191
        %212 = vmatprep.subr.mxu0 0.0
        %213 = vmatpush1.xpose.msra.mxu0 %v190
        %214 = vmatprep.subr.mxu0 0.0
        %215 = vmatpush1.xpose.msra.mxu0 %v189
        %216 = vmatprep.subr.mxu0 0.0
        %217 = vmatpush1.xpose.msra.mxu0 %v188
        %218 = vmatprep.subr.mxu0 0.0
        %219 = vmatpush1.xpose.msra.mxu0 %v187
        %220 = vmatprep.subr.mxu0 0.0
        %221 = vmatpush1.xpose.msra.mxu0 %v186
        %222 = vmatprep.subr.mxu0 0.0
        %223 = vmatpush1.xpose.msra.mxu0 %v185
        %224 = vmatprep.subr.mxu0 0.0
        %225 = vmatpush1.xpose.msra.mxu0 %v184
        %226 = vmatprep.subr.mxu0 0.0
        %227 = vmatpush1.xpose.msra.mxu0 %v183
        %228 = vmatprep.subr.mxu0 0.0
        %229 = vmatpush1.xpose.msra.mxu0 %v182
        %230 = vmatprep.subr.mxu0 0.0
        %231 = vmatpush2.xpose.msra.mxu0 0.0
        %232 = vmatprep.subr.mxu0 0.0
        %233 = vmatpush2.xpose.msra.mxu0 0.0
        %234 = vmatprep.subr.mxu0 0.0
        %235 = vmatpush2.xpose.msra.mxu0 0.0
        %236 = vmatprep.subr.mxu0 0.0
        %237 = vmatpush2.xpose.msra.mxu0 0.0
        %238 = vmatprep.subr.mxu0 0.0
        %239 = vmatpush2.xpose.msra.mxu0 0.0
        %240 = vmatprep.subr.mxu0 0.0
        %241 = vmatpush2.xpose.msra.mxu0 0.0
        %242 = vmatprep.subr.mxu0 0.0
        %243 = vmatpush2.xpose.msra.mxu0 0.0
        %244 = vmatprep.subr.mxu0 0.0
        %245 = vmatpush2.xpose.msra.mxu0 0.0
        %246 = vmatprep.subr.mxu0 0.0
        %247 = vmatpush2.xpose.msra.mxu0 0.0
        %248 = vmatprep.subr.mxu0 0.0
        %249 = vmatpush2.xpose.msra.mxu0 0.0
        %250 = vmatprep.subr.mxu0 0.0
        %251 = vmatpush2.xpose.msra.mxu0 0.0
        %252 = vmatprep.subr.mxu0 0.0
        %253 = vmatpush2.xpose.msra.mxu0 0.0
        %254 = vmatprep.subr.mxu0 0.0
        %255 = vmatpush2.xpose.msra.mxu0 0.0
        %256 = vmatprep.subr.mxu0 0.0
        %257 = vmatpush2.xpose.msra.mxu0 0.0
        %258 = vmatprep.subr.mxu0 0.0
        %259 = vmatpush2.xpose.msra.mxu0 0.0
        %260 = vmatprep.subr.mxu0 0.0
        %261 = vmatpush2.xpose.msra.mxu0 0.0
        %262 = vmatprep.mubr.f32.mxu0 0.0
        %263 = vmatmul.mubr.f32.gmra.mxu0 %v181
        %v264 = vpop.f32.mrf.mxu0
        %v265 = vadd.f32 0.0, %v264
        %v266 = vpop.f32.mrf.mxu0
        %267 = vdwg.mxu0
        %s268 = smul.u32 %s18, 128
        %v269 = vlaneseq
        %v270 = vand.u32 %v269, 127
        %v271 = vstv %s268
        %v272 = vadd.s32 %v271, %v270
        %vm273 = vcmp.lt.s32.totalorder %v272, 520
        %v274 = vsel %vm273, %v265, -inf
        %v275 = vld [vmem:[#allocation2] sm:$0xff]
        %v276 = vld [vmem:[#allocation3] sm:$0xff]
        %v277 = vmax.f32 %v275, %v274
        %278 = vmax.xlane.f32.xlu0 %v277
        %v279 = vpop.xlane.xlu0 %278
        %vm280 = vcmp.eq.f32.partialorder %v275, %v279
        %vm281 = vcmp.eq.f32.partialorder %v274, %v279
        %v282 = vsel %vm280, %v276, 776
        %v283 = vsel %vm281, %v272, 776
        %vm284 = vcmp.lt.s32.totalorder %v282, %v283
        %v285 = vsel %vm284, %v282, %v283
        %v286 = vand.u32 %v285, 65535
        %v287 = vshra.s32 %v285, 16
        %v288 = vcvt.s32.f32 %v286
        %v289 = vcvt.s32.f32 %v287
        %290 = vmin.xlane.f32.xlu0 %v289
        %v291 = vpop.xlane.xlu0 %290
        %vm292 = vcmp.eq.f32.partialorder %v289, %v291
        %v293 = vsel %vm292, %v288, inf
        %294 = vmin.xlane.f32.xlu0 %v293
        %v295 = vpop.xlane.xlu0 %294
        %v296 = vcvt.f32.s32 %v295
        %v297 = vcvt.f32.s32 %v291
        %v298 = vshll.u32 %v297, 16
        %v299 = vadd.s32 %v298, %v296
        %vm300 = vcmask 7168
        %301 = vst.msk [vmem:[#allocation2] sm:$0xff] %vm300, %v279
        %302 = vst.msk [vmem:[#allocation3] sm:$0xff] %vm300, %v299
        %303 = vst.msk [vmem:[#allocation9] sm:$0xff] %vm300, %v299
        %vm304 = vcmp.eq.s32.totalorder %v276, %v299
        %vm305 = vcmp.eq.s32.totalorder %v272, %v299
        %vm306 = vmand %vm280, %vm304
        %vm307 = vmand %vm281, %vm305
        %v308 = vsel %vm306, -inf, %v275
        %v309 = vsel %vm307, -inf, %v274
        %v310 = vmax.f32 %v308, %v309
        %311 = vmax.xlane.f32.xlu0 %v310
        %v312 = vpop.xlane.xlu0 %311
        %vm313 = vcmp.eq.f32.partialorder %v308, %v312
        %vm314 = vcmp.eq.f32.partialorder %v309, %v312
        %v315 = vsel %vm313, %v276, 776
        %v316 = vsel %vm314, %v272, 776
        %vm317 = vcmp.lt.s32.totalorder %v315, %v316
        %v318 = vsel %vm317, %v315, %v316
        %v319 = vand.u32 %v318, 65535
        %v320 = vshra.s32 %v318, 16
        %v321 = vcvt.s32.f32 %v319
        %v322 = vcvt.s32.f32 %v320
        %323 = vmin.xlane.f32.xlu0 %v322
        %v324 = vpop.xlane.xlu0 %323
        %vm325 = vcmp.eq.f32.partialorder %v322, %v324
        %v326 = vsel %vm325, %v321, inf
        %327 = vmin.xlane.f32.xlu0 %v326
        %v328 = vpop.xlane.xlu0 %327
        %v329 = vcvt.f32.s32 %v328
        %v330 = vcvt.f32.s32 %v324
        %v331 = vshll.u32 %v330, 16
        %v332 = vadd.s32 %v331, %v329
        %vm333 = vcmask 15368
        %334 = vst.msk [vmem:[#allocation2] sm:$0xff] %vm333, %v312
        %335 = vst.msk [vmem:[#allocation3] sm:$0xff] %vm333, %v332
        %336 = vst.msk [vmem:[#allocation9] sm:$0xff] %vm333, %v332
        %vm337 = vcmp.eq.s32.totalorder %v276, %v332
        %vm338 = vcmp.eq.s32.totalorder %v272, %v332
        %vm339 = vmand %vm313, %vm337
        %vm340 = vmand %vm314, %vm338
        %v341 = vsel %vm339, -inf, %v308
        %v342 = vsel %vm340, -inf, %v309
        %v343 = vmax.f32 %v341, %v342
        %344 = vmax.xlane.f32.xlu0 %v343
        %v345 = vpop.xlane.xlu0 %344
        %vm346 = vcmp.eq.f32.partialorder %v341, %v345
        %vm347 = vcmp.eq.f32.partialorder %v342, %v345
        %v348 = vsel %vm346, %v276, 776
        %v349 = vsel %vm347, %v272, 776
        %vm350 = vcmp.lt.s32.totalorder %v348, %v349
        %v351 = vsel %vm350, %v348, %v349
        %v352 = vand.u32 %v351, 65535
        %v353 = vshra.s32 %v351, 16
        %v354 = vcvt.s32.f32 %v352
        %v355 = vcvt.s32.f32 %v353
        %356 = vmin.xlane.f32.xlu0 %v355
        %v357 = vpop.xlane.xlu0 %356
        %vm358 = vcmp.eq.f32.partialorder %v355, %v357
        %v359 = vsel %vm358, %v354, inf
        %360 = vmin.xlane.f32.xlu0 %v359
        %v361 = vpop.xlane.xlu0 %360
        %v362 = vcvt.f32.s32 %v361
        %v363 = vcvt.f32.s32 %v357
        %v364 = vshll.u32 %v363, 16
        %v365 = vadd.s32 %v364, %v362
        %vm366 = vcmask 23568
        %367 = vst.msk [vmem:[#allocation2] sm:$0xff] %vm366, %v345
        %368 = vst.msk [vmem:[#allocation3] sm:$0xff] %vm366, %v365
        %369 = vst.msk [vmem:[#allocation9] sm:$0xff] %vm366, %v365
        %vm370 = vcmp.eq.s32.totalorder %v276, %v365
        %vm371 = vcmp.eq.s32.totalorder %v272, %v365
        %vm372 = vmand %vm346, %vm370
        %vm373 = vmand %vm347, %vm371
        %v374 = vsel %vm372, -inf, %v341
        %v375 = vsel %vm373, -inf, %v342
        %v376 = vmax.f32 %v374, %v375
        %377 = vmax.xlane.f32.xlu0 %v376
        %v378 = vpop.xlane.xlu0 %377
        %vm379 = vcmp.eq.f32.partialorder %v374, %v378
        %vm380 = vcmp.eq.f32.partialorder %v375, %v378
        %v381 = vsel %vm379, %v276, 776
        %v382 = vsel %vm380, %v272, 776
        %vm383 = vcmp.lt.s32.totalorder %v381, %v382
        %v384 = vsel %vm383, %v381, %v382
        %v385 = vand.u32 %v384, 65535
        %v386 = vshra.s32 %v384, 16
        %v387 = vcvt.s32.f32 %v385
        %v388 = vcvt.s32.f32 %v386
        %389 = vmin.xlane.f32.xlu0 %v388
        %v390 = vpop.xlane.xlu0 %389
        %vm391 = vcmp.eq.f32.partialorder %v388, %v390
        %v392 = vsel %vm391, %v387, inf
        %393 = vmin.xlane.f32.xlu0 %v392
        %v394 = vpop.xlane.xlu0 %393
        %v395 = vcvt.f32.s32 %v394
        %v396 = vcvt.f32.s32 %v390
        %v397 = vshll.u32 %v396, 16
        %v398 = vadd.s32 %v397, %v395
        %vm399 = vcmask 31768
        %400 = vst.msk [vmem:[#allocation2] sm:$0xff] %vm399, %v378
        %401 = vst.msk [vmem:[#allocation3] sm:$0xff] %vm399, %v398
        %402 = vst.msk [vmem:[#allocation9] sm:$0xff] %vm399, %v398
        %vm403 = vcmp.eq.s32.totalorder %v276, %v398
        %vm404 = vcmp.eq.s32.totalorder %v272, %v398
        %vm405 = vmand %vm379, %vm403
        %vm406 = vmand %vm380, %vm404
        %v407 = vsel %vm405, -inf, %v374
        %v408 = vsel %vm406, -inf, %v375
        %v409 = vmax.f32 %v407, %v408
        %410 = vmax.xlane.f32.xlu0 %v409
        %v411 = vpop.xlane.xlu0 %410
        %vm412 = vcmp.eq.f32.partialorder %v407, %v411
        %vm413 = vcmp.eq.f32.partialorder %v408, %v411
        %v414 = vsel %vm412, %v276, 776
        %v415 = vsel %vm413, %v272, 776
        %vm416 = vcmp.lt.s32.totalorder %v414, %v415
        %v417 = vsel %vm416, %v414, %v415
        %v418 = vand.u32 %v417, 65535
        %v419 = vshra.s32 %v417, 16
        %v420 = vcvt.s32.f32 %v418
        %v421 = vcvt.s32.f32 %v419
        %422 = vmin.xlane.f32.xlu0 %v421
        %v423 = vpop.xlane.xlu0 %422
        %vm424 = vcmp.eq.f32.partialorder %v421, %v423
        %v425 = vsel %vm424, %v420, inf
        %426 = vmin.xlane.f32.xlu0 %v425
        %v427 = vpop.xlane.xlu0 %426
        %v428 = vcvt.f32.s32 %v427
        %v429 = vcvt.f32.s32 %v423
        %v430 = vshll.u32 %v429, 16
        %v431 = vadd.s32 %v430, %v428
        %vm432 = vcmask 39968
        %433 = vst.msk [vmem:[#allocation2] sm:$0xff] %vm432, %v411
        %434 = vst.msk [vmem:[#allocation3] sm:$0xff] %vm432, %v431
        %435 = vst.msk [vmem:[#allocation9] sm:$0xff] %vm432, %v431
        %vm436 = vcmp.eq.s32.totalorder %v276, %v431
        %vm437 = vcmp.eq.s32.totalorder %v272, %v431
        %vm438 = vmand %vm412, %vm436
        %vm439 = vmand %vm413, %vm437
        %v440 = vsel %vm438, -inf, %v407
        %v441 = vsel %vm439, -inf, %v408
        %v442 = vmax.f32 %v440, %v441
        %443 = vmax.xlane.f32.xlu0 %v442
        %v444 = vpop.xlane.xlu0 %443
        %vm445 = vcmp.eq.f32.partialorder %v440, %v444
        %vm446 = vcmp.eq.f32.partialorder %v441, %v444
        %v447 = vsel %vm445, %v276, 776
        %v448 = vsel %vm446, %v272, 776
        %vm449 = vcmp.lt.s32.totalorder %v447, %v448
        %v450 = vsel %vm449, %v447, %v448
        %v451 = vand.u32 %v450, 65535
        %v452 = vshra.s32 %v450, 16
        %v453 = vcvt.s32.f32 %v451
        %v454 = vcvt.s32.f32 %v452
        %455 = vmin.xlane.f32.xlu0 %v454
        %v456 = vpop.xlane.xlu0 %455
        %vm457 = vcmp.eq.f32.partialorder %v454, %v456
        %v458 = vsel %vm457, %v453, inf
        %459 = vmin.xlane.f32.xlu0 %v458
        %v460 = vpop.xlane.xlu0 %459
        %v461 = vcvt.f32.s32 %v460
        %v462 = vcvt.f32.s32 %v456
        %v463 = vshll.u32 %v462, 16
        %v464 = vadd.s32 %v463, %v461
        %vm465 = vcmask 48168
        %466 = vst.msk [vmem:[#allocation2] sm:$0xff] %vm465, %v444
        %467 = vst.msk [vmem:[#allocation3] sm:$0xff] %vm465, %v464
        %468 = vst.msk [vmem:[#allocation9] sm:$0xff] %vm465, %v464
        %vm469 = vcmp.eq.s32.totalorder %v276, %v464
        %vm470 = vcmp.eq.s32.totalorder %v272, %v464
        %vm471 = vmand %vm445, %vm469
        %vm472 = vmand %vm446, %vm470
        %v473 = vsel %vm471, -inf, %v440
        %v474 = vsel %vm472, -inf, %v441
        %v475 = vmax.f32 %v473, %v474
        %476 = vmax.xlane.f32.xlu0 %v475
        %v477 = vpop.xlane.xlu0 %476
        %vm478 = vcmp.eq.f32.partialorder %v473, %v477
        %vm479 = vcmp.eq.f32.partialorder %v474, %v477
        %v480 = vsel %vm478, %v276, 776
        %v481 = vsel %vm479, %v272, 776
        %vm482 = vcmp.lt.s32.totalorder %v480, %v481
        %v483 = vsel %vm482, %v480, %v481
        %v484 = vand.u32 %v483, 65535
        %v485 = vshra.s32 %v483, 16
        %v486 = vcvt.s32.f32 %v484
        %v487 = vcvt.s32.f32 %v485
        %488 = vmin.xlane.f32.xlu0 %v487
        %v489 = vpop.xlane.xlu0 %488
        %vm490 = vcmp.eq.f32.partialorder %v487, %v489
        %v491 = vsel %vm490, %v486, inf
        %492 = vmin.xlane.f32.xlu0 %v491
        %v493 = vpop.xlane.xlu0 %492
        %v494 = vcvt.f32.s32 %v493
        %v495 = vcvt.f32.s32 %v489
        %v496 = vshll.u32 %v495, 16
        %v497 = vadd.s32 %v496, %v494
        %vm498 = vcmask 56368
        %499 = vst.msk [vmem:[#allocation2] sm:$0xff] %vm498, %v477
        %500 = vst.msk [vmem:[#allocation3] sm:$0xff] %vm498, %v497
        %501 = vst.msk [vmem:[#allocation9] sm:$0xff] %vm498, %v497
        %vm502 = vcmp.eq.s32.totalorder %v276, %v497
        %vm503 = vcmp.eq.s32.totalorder %v272, %v497
        %vm504 = vmand %vm478, %vm502
        %vm505 = vmand %vm479, %vm503
        %v506 = vsel %vm504, -inf, %v473
        %v507 = vsel %vm505, -inf, %v474
        %v508 = vmax.f32 %v506, %v507
        %509 = vmax.xlane.f32.xlu0 %v508
        %v510 = vpop.xlane.xlu0 %509
        %vm511 = vcmp.eq.f32.partialorder %v506, %v510
        %vm512 = vcmp.eq.f32.partialorder %v507, %v510
        %v513 = vsel %vm511, %v276, 776
        %v514 = vsel %vm512, %v272, 776
        %vm515 = vcmp.lt.s32.totalorder %v513, %v514
        %v516 = vsel %vm515, %v513, %v514
        %v517 = vand.u32 %v516, 65535
        %v518 = vshra.s32 %v516, 16
        %v519 = vcvt.s32.f32 %v517
        %v520 = vcvt.s32.f32 %v518
        %521 = vmin.xlane.f32.xlu0 %v520
        %v522 = vpop.xlane.xlu0 %521
        %vm523 = vcmp.eq.f32.partialorder %v520, %v522
        %v524 = vsel %vm523, %v519, inf
        %525 = vmin.xlane.f32.xlu0 %v524
        %v526 = vpop.xlane.xlu0 %525
        %v527 = vcvt.f32.s32 %v526
        %v528 = vcvt.f32.s32 %v522
        %v529 = vshll.u32 %v528, 16
        %v530 = vadd.s32 %v529, %v527
        %vm531 = vcmask 64568
        %532 = vst.msk [vmem:[#allocation2] sm:$0xff] %vm531, %v510
        %533 = vst.msk [vmem:[#allocation3] sm:$0xff] %vm531, %v530
        %534 = vst.msk [vmem:[#allocation9] sm:$0xff] %vm531, %v530
        // Predicated region
        $region41: #{tpu_custom_call.1} parent=27 // pred_check
          %p535 = pneg %p78
        $region42: #{tpu_custom_call.1} parent=27 // pred_check_branch
          %537 = sbr.rel (%p535) target = $region44
        $region43: #{tpu_custom_call.1} parent=27 // pred_region
          %s539 = ssub.s32 128, 128
          %540 = vsyncadd [#allocation6], %s539
          %s542 = sshll.u32 [#allocation9], 4
          %s543 = int_to_ptr.vmem [resolvable:$true] %s542
          %545 = dma.vmem_to_hbm [thread:$0]  %s543, 128, %s2, [#allocation6]
        $region44: #{tpu_custom_call.1} parent=27 // pred_fallthru
          _
        // Predicated region
        $region45: #{tpu_custom_call.1} parent=27 // pred_check
          %p546 = pneg %p78
        $region46: #{tpu_custom_call.1} parent=27 // pred_check_branch
          %548 = sbr.rel (%p546) target = $region48
        $region47: #{tpu_custom_call.1} parent=27 // pred_region
          %549 = dma.done [#allocation6], 128
        $region48: #{tpu_custom_call.1} parent=27 // pred_fallthru
          _
      $region28: #{tpu_custom_call.1} parent=5 // pred_fallthru
        _
      %p550 = scmp.le.s32.totalorder 2, %s13
      // Predicated region
      $region49: #{tpu_custom_call.1} parent=5 // pred_check
        %p551 = pneg %p550
      $region50: #{tpu_custom_call.1} parent=5 // pred_check_branch
        %553 = sbr.rel (%p551) target = $region52
      $region51: #{tpu_custom_call.1} parent=5 // pred_region
        %s554 = ssub.s32 %s13, 2
      $region52: #{tpu_custom_call.1} parent=5 // pred_fallthru
        _
    $region6: #{tpu_custom_call.1} parent=1 // loop_footer
      %s17 = sadd.s32 1, %s13
    $region7: #{tpu_custom_call.1} parent=1 // loop_footer_branch
      %12 = sbr.rel target = $region3
    $region8: #{tpu_custom_call.1} parent=1 // loop_exit
      _
    %555 = vsyncpa [#allocation5], 1
    %s556 = scalar_lea.sflag [#allocation5], 1
    %557 = vsyncpa %s556, 1
    %558 = vsyncpa [#allocation8], 1
    %s559 = scalar_lea.sflag [#allocation8], 1
    %560 = vsyncpa %s559, 1
    %561 = vsyncpa [#allocation6], 1
    %s562 = scalar_lea.sflag [#allocation6], 1
    %563 = vsyncpa %s562, 1

</llo_original>
